<compile_context>
chip_gen: v7x
topology: tpu7x:2x2x1
jax: 0.10.0
libtpu: 0.0.40
codegen_flags: <defaults>
</compile_context>

<pallas_src>
import jax
import jax.numpy as jnp
from jax.experimental import pallas as pl
from jax.experimental.pallas import tpu as pltpu

BN_EPS = 1e-5


def _make_kernel(C_in, L, NL, K, pad_left, tc):
    inv_count = 1.0 / float(NL)

    def kernel(x_ref, w1_ref, b1_ref, gamma_ref, beta_ref,
               wres_ref, bres_ref, o_ref):
        # x_ref : (C_in, NL + K - 1) halo-padded flat slab (compute dtype)
        # w1_ref: (tc, K*C_in)       tap-major conv1 weights
        # o_ref : (tc, NL)
        w1 = w1_ref[...]

        # Center tap (offset 0) is exactly the un-padded input; it is reused
        # by the 1x1 residual conv so x is only read once.
        x_center = x_ref[:, pad_left:pad_left + NL]

        # Position of each lane within its sample, to zero the cross-sample
        # halo positions ('same' padding handled in-register, no padded HBM x).
        if K > 1:
            l_pos = jax.lax.broadcasted_iota(jnp.int32, (C_in, NL), 1) % L

        acc = jnp.zeros((tc, NL), jnp.float32)
        for dk in range(K):                         # K is small & static
            d = dk - pad_left
            if d == 0:
                xs = x_center
            else:
                xs = x_ref[:, pad_left + d:pad_left + d + NL]
                if d > 0:
                    xs = jnp.where(l_pos < L - d, xs, jnp.zeros_like(xs))
                else:
                    xs = jnp.where(l_pos >= -d, xs, jnp.zeros_like(xs))
            acc = acc + jnp.dot(w1[:, dk * C_in:(dk + 1) * C_in], xs,
                                preferred_element_type=jnp.float32)
        acc = acc + b1_ref[...]                     # (tc, NL) f32 conv1 output

        # BatchNorm1d (training-mode batch statistics over (N, L) == lanes),
        # single-pass sum / sum-of-squares, folded into one FMA per element.
        s = jnp.sum(acc, axis=1, keepdims=True)
        ss = jnp.sum(acc * acc, axis=1, keepdims=True)
        mean = s * inv_count
        var = ss * inv_count - mean * mean
        scale = gamma_ref[...] * jax.lax.rsqrt(var + BN_EPS)
        shift = beta_ref[...] - mean * scale
        y = jnp.maximum(acc * scale + shift, 0.0)   # BN + ReLU

        # Residual 1x1 conv on the same center-tap slab (no second x read).
        res = jnp.dot(wres_ref[...], x_center,
                      preferred_element_type=jnp.float32) + bres_ref[...]

        o_ref[...] = (y + res).astype(o_ref.dtype)

    return kernel


def decoder_block_forward(x, params, kernel_size, *, block_c_out=8,
                          compute_dtype=None):
    """x: (N, C_in, L). Returns (N, C_out, L) matching the PyTorch module."""
    N, C_in, L = x.shape
    K = kernel_size
    C_out = params['w1'].shape[0]
    NL = N * L
    pad_left = (K - 1) // 2
    pad_right = K - 1 - pad_left
    cdt = compute_dtype if compute_dtype is not None else x.dtype

    # ---- layout plumbing (each fuses into a single XLA copy) --------------
    # Channels on sublanes, flattened N*L on lanes, plus a (K-1)-column zero
    # halo at the two global ends so every conv tap is a static, in-bounds
    # slice inside the kernel. Per-sample 'same' boundaries are masked in the
    # kernel, so no full padded copy of x is round-tripped through HBM.
    x_flat = jnp.transpose(x, (1, 0, 2)).reshape(C_in, NL)
    x_flat = jnp.pad(x_flat, ((0, 0), (pad_left, pad_right))).astype(cdt)

    # conv1 weights, tap-major 2D: column block dk holds w1[:, :, dk].
    w1_2d = jnp.transpose(params['w1'], (0, 2, 1)).reshape(C_out, K * C_in)
    w1_2d = w1_2d.astype(cdt)
    wres_2d = params['wres'].reshape(C_out, C_in).astype(cdt)
    b1 = params['b1'].reshape(C_out, 1).astype(jnp.float32)
    gamma = params['gamma'].reshape(C_out, 1).astype(jnp.float32)
    beta = params['beta'].reshape(C_out, 1).astype(jnp.float32)
    bres = params['bres'].reshape(C_out, 1).astype(jnp.float32)

    # ---- grid: tile over output channels ("parallel"); BN stats are
    # per-channel so tiles are independent and megacore-shardable on v7x.
    tc = block_c_out if (C_out % block_c_out == 0) else C_out
    tc = min(tc, C_out)
    grid = (C_out // tc,)

    # TODO(synk): for very long N*L, additionally tile the lane axis with a
    # two-sweep per-channel sum/sumsq accumulation + normalize pass so x/out
    # tiles stream through VMEM instead of being fully resident.

    kernel = _make_kernel(C_in, L, NL, K, pad_left, tc)

    itemsize = jnp.dtype(cdt).itemsize
    cost = pl.CostEstimate(
        flops=2 * NL * C_out * C_in * (K + 1) + 10 * NL * C_out,
        transcendentals=C_out,
        bytes_accessed=(x_flat.size * itemsize + w1_2d.size * itemsize
                        + wres_2d.size * itemsize
                        + C_out * NL * x.dtype.itemsize),
    )

    out_flat = pl.pallas_call(
        kernel,
        out_shape=jax.ShapeDtypeStruct((C_out, NL), x.dtype),
        grid=grid,
        in_specs=[
            pl.BlockSpec((C_in, NL + K - 1), lambda i: (0, 0)),  # x slab
            pl.BlockSpec((tc, K * C_in), lambda i: (i, 0)),      # w1
            pl.BlockSpec((tc, 1), lambda i: (i, 0)),             # b1
            pl.BlockSpec((tc, 1), lambda i: (i, 0)),             # gamma
            pl.BlockSpec((tc, 1), lambda i: (i, 0)),             # beta
            pl.BlockSpec((tc, C_in), lambda i: (i, 0)),          # wres
            pl.BlockSpec((tc, 1), lambda i: (i, 0)),             # bres
        ],
        out_specs=pl.BlockSpec((tc, NL), lambda i: (i, 0)),      # lane-dense
        compiler_params=pltpu.CompilerParams(
            dimension_semantics=("parallel",),
            vmem_limit_bytes=32 * 1024 * 1024),
        cost_estimate=cost,
    )(x_flat, w1_2d, b1, gamma, beta, wres_2d, bres)

    # One boundary reshape back to the module's (N, C_out, L) layout.
    return out_flat.reshape(C_out, N, L).transpose(1, 0, 2)


def reference_forward(x, params, kernel_size):
    """Pure-JAX reference (lax conv) matching PyTorch semantics."""
    C_out = params['w1'].shape[0]
    y = jax.lax.conv_general_dilated(
        x, params['w1'], window_strides=(1,), padding='SAME',
        dimension_numbers=('NCH', 'OIH', 'NCH'))
    y = y + params['b1'].reshape(1, C_out, 1)
    mean = jnp.mean(y, axis=(0, 2), keepdims=True)
    var = jnp.mean((y - mean) ** 2, axis=(0, 2), keepdims=True)
    y = (y - mean) / jnp.sqrt(var + BN_EPS)
    y = y * params['gamma'].reshape(1, C_out, 1) + params['beta'].reshape(1, C_out, 1)
    y = jnp.maximum(y, 0.0)
    res = jax.lax.conv_general_dilated(
        x, params['wres'], window_strides=(1,), padding='SAME',
        dimension_numbers=('NCH', 'OIH', 'NCH'))
    res = res + params['bres'].reshape(1, C_out, 1)
    return y + res


def init_params(key, in_channels, out_channels, kernel_size):
    k1, k2, k3, k4 = jax.random.split(key, 4)
    w1 = jax.random.normal(k1, (out_channels, in_channels, kernel_size),
                           jnp.float32) * 0.2
    b1 = jax.random.normal(k2, (out_channels,), jnp.float32) * 0.1
    wres = jax.random.normal(k3, (out_channels, in_channels, 1),
                             jnp.float32) * 0.2
    bres = jax.random.normal(k4, (out_channels,), jnp.float32) * 0.1
    gamma = jnp.ones((out_channels,), jnp.float32)
    beta = jnp.zeros((out_channels,), jnp.float32)
    return dict(w1=w1, b1=b1, wres=wres, bres=bres, gamma=gamma, beta=beta)


if __name__ == "__main__":
    # Small shapes; N*L = 128 so output blocks are lane-dense, and
    # C_out=16 with 8-channel tiles gives a real (parallel) grid.
    N, C_in, C_out, L, K = 8, 4, 16, 16, 3

    key = jax.random.PRNGKey(0)
    kx, kp = jax.random.split(key)
    x = jax.random.normal(kx, (N, C_in, L), jnp.float32)
    params = init_params(kp, C_in, C_out, K)

    out = jax.block_until_ready(decoder_block_forward(x, params, K))
    ref = jax.block_until_ready(reference_forward(x, params, K))
    assert out.shape == (N, C_out, L)
    err = float(jnp.max(jnp.abs(out - ref)))
    assert jnp.allclose(out, ref, atol=1e-4, rtol=1e-4), f"max abs diff {err}"

    # bf16 compute path (halves HBM/VMEM traffic; MXU-native on v5e/v6e/v7x).
    # Matmul accumulation and BN statistics stay in f32 inside the kernel.
    out_bf16 = jax.block_until_ready(
        decoder_block_forward(x, params, K, compute_dtype=jnp.bfloat16))
    err_bf16 = float(jnp.max(jnp.abs(out_bf16 - ref)))
    assert jnp.allclose(out_bf16, ref, atol=1e-1, rtol=1e-1), \
        f"bf16 max abs diff {err_bf16}"

    print("KERNEL_OK")
</pallas_src>

<mosaic_0001>
module attributes {stable_mosaic.version = 11 : i64} {
  func.func @kernel(%arg0: i32, %arg1: memref<4x130xf32, #tpu.memory_space<vmem>>, %arg2: memref<8x12xf32, #tpu.memory_space<vmem>>, %arg3: memref<8x1xf32, #tpu.memory_space<vmem>>, %arg4: memref<8x1xf32, #tpu.memory_space<vmem>>, %arg5: memref<8x1xf32, #tpu.memory_space<vmem>>, %arg6: memref<8x4xf32, #tpu.memory_space<vmem>>, %arg7: memref<8x1xf32, #tpu.memory_space<vmem>>, %arg8: memref<8x128xf32, #tpu.memory_space<vmem>>) attributes {dimension_semantics = [#tpu.dimension_semantics<parallel>], iteration_bounds = array<i64: 2>, scalar_prefetch = 0 : i64, scratch_operands = 0 : i64, tpu.core_type = #tpu.core_type<tc>, window_params = [{pipeline_mode = #tpu.pipeline_mode<synchronous>, transform_indices = @transform_0, window_bounds = array<i64: 4, 130>}, {transform_indices = @transform_1, window_bounds = array<i64: 8, 12>}, {transform_indices = @transform_2, window_bounds = array<i64: 8, 1>}, {transform_indices = @transform_3, window_bounds = array<i64: 8, 1>}, {transform_indices = @transform_4, window_bounds = array<i64: 8, 1>}, {transform_indices = @transform_5, window_bounds = array<i64: 8, 4>}, {transform_indices = @transform_6, window_bounds = array<i64: 8, 1>}, {transform_indices = @transform_7, window_bounds = array<i64: 8, 128>}]} {
    %c0 = arith.constant 0 : index
    %c0_0 = arith.constant 0 : index
    %0 = vector.load %arg2[%c0, %c0_0] : memref<8x12xf32, #tpu.memory_space<vmem>>, vector<8x12xf32>
    %c0_1 = arith.constant 0 : index
    %c1 = arith.constant 1 : index
    %1 = vector.load %arg1[%c0_1, %c1] : memref<4x130xf32, #tpu.memory_space<vmem>>, vector<4x128xf32>
    %2 = tpu.iota {dimensions = array<i32: 1>} : vector<4x128xi32>
    %c16_i32 = arith.constant 16 : i32
    %c0_i32 = arith.constant 0 : i32
    %3 = arith.cmpi eq, %c16_i32, %c0_i32 : i32
    %c1_i32 = arith.constant 1 : i32
    %4 = arith.select %3, %c1_i32, %c16_i32 : i32
    %5 = vector.broadcast %4 : i32 to vector<4x128xi32>
    %6 = arith.remsi %2, %5 : vector<4x128xi32>
    %c0_i32_2 = arith.constant 0 : i32
    %7 = vector.broadcast %c0_i32_2 : i32 to vector<4x128xi32>
    %8 = arith.cmpi ne, %6, %7 : vector<4x128xi32>
    %c0_i32_3 = arith.constant 0 : i32
    %9 = vector.broadcast %c0_i32_3 : i32 to vector<4x128xi32>
    %10 = arith.cmpi slt, %6, %9 : vector<4x128xi32>
    %c0_i32_4 = arith.constant 0 : i32
    %11 = arith.cmpi slt, %4, %c0_i32_4 : i32
    %12 = vector.broadcast %11 : i1 to vector<4x128xi1>
    %13 = vector.broadcast %12 : vector<4x128xi1> to vector<4x128xi1>
    %14 = arith.xori %10, %13 : vector<4x128xi1>
    %15 = arith.andi %14, %8 : vector<4x128xi1>
    %16 = vector.broadcast %4 : i32 to vector<4x128xi32>
    %17 = arith.addi %6, %16 : vector<4x128xi32>
    %18 = arith.select %15, %17, %6 : vector<4x128xi1>, vector<4x128xi32>
    %cst = arith.constant 0.000000e+00 : f32
    %19 = vector.broadcast %cst : f32 to vector<8x128xf32>
    %c0_5 = arith.constant 0 : index
    %c0_6 = arith.constant 0 : index
    %20 = vector.load %arg1[%c0_5, %c0_6] : memref<4x130xf32, #tpu.memory_space<vmem>>, vector<4x128xf32>
    %c1_i32_7 = arith.constant 1 : i32
    %21 = vector.broadcast %c1_i32_7 : i32 to vector<4x128xi32>
    %22 = arith.cmpi sge, %18, %21 : vector<4x128xi32>
    %cst_8 = arith.constant 0.000000e+00 : f32
    %23 = vector.broadcast %cst_8 : f32 to vector<4x128xf32>
    %24 = arith.select %22, %20, %23 : vector<4x128xi1>, vector<4x128xf32>
    %25 = vector.extract_strided_slice %0 {offsets = [0, 0], sizes = [8, 4], strides = [1, 1]} : vector<8x12xf32> to vector<8x4xf32>
    %cst_9 = arith.constant dense<0.000000e+00> : vector<8x128xf32>
    %26 = tpu.matmul %25, %24, %cst_9 {dimension_numbers = #tpu.dot_dimension_numbers<[1], [0], [0], [1], [0, 0, 1, 1], [], []>} : vector<8x4xf32>, vector<4x128xf32>, vector<8x128xf32> -> vector<8x128xf32>
    %27 = arith.addf %19, %26 : vector<8x128xf32>
    %28 = vector.extract_strided_slice %0 {offsets = [0, 4], sizes = [8, 4], strides = [1, 1]} : vector<8x12xf32> to vector<8x4xf32>
    %cst_10 = arith.constant dense<0.000000e+00> : vector<8x128xf32>
    %29 = tpu.matmul %28, %1, %cst_10 {dimension_numbers = #tpu.dot_dimension_numbers<[1], [0], [0], [1], [0, 0, 1, 1], [], []>} : vector<8x4xf32>, vector<4x128xf32>, vector<8x128xf32> -> vector<8x128xf32>
    %30 = arith.addf %27, %29 : vector<8x128xf32>
    %c0_11 = arith.constant 0 : index
    %c2 = arith.constant 2 : index
    %31 = vector.load %arg1[%c0_11, %c2] : memref<4x130xf32, #tpu.memory_space<vmem>>, vector<4x128xf32>
    %c15_i32 = arith.constant 15 : i32
    %32 = vector.broadcast %c15_i32 : i32 to vector<4x128xi32>
    %33 = arith.cmpi slt, %18, %32 : vector<4x128xi32>
    %cst_12 = arith.constant 0.000000e+00 : f32
    %34 = vector.broadcast %cst_12 : f32 to vector<4x128xf32>
    %35 = arith.select %33, %31, %34 : vector<4x128xi1>, vector<4x128xf32>
    %36 = vector.extract_strided_slice %0 {offsets = [0, 8], sizes = [8, 4], strides = [1, 1]} : vector<8x12xf32> to vector<8x4xf32>
    %cst_13 = arith.constant dense<0.000000e+00> : vector<8x128xf32>
    %37 = tpu.matmul %36, %35, %cst_13 {dimension_numbers = #tpu.dot_dimension_numbers<[1], [0], [0], [1], [0, 0, 1, 1], [], []>} : vector<8x4xf32>, vector<4x128xf32>, vector<8x128xf32> -> vector<8x128xf32>
    %38 = arith.addf %30, %37 : vector<8x128xf32>
    %c0_14 = arith.constant 0 : index
    %c0_15 = arith.constant 0 : index
    %39 = vector.load %arg3[%c0_14, %c0_15] : memref<8x1xf32, #tpu.memory_space<vmem>>, vector<8x1xf32>
    %40 = vector.broadcast %39 : vector<8x1xf32> to vector<8x128xf32>
    %41 = arith.addf %38, %40 : vector<8x128xf32>
    %cst_16 = arith.constant dense<0.000000e+00> : vector<8xf32>
    %42 = vector.multi_reduction <add>, %41, %cst_16 [1] : vector<8x128xf32> to vector<8xf32>
    %43 = vector.shape_cast %42 : vector<8xf32> to vector<8x1xf32>
    %44 = arith.mulf %41, %41 : vector<8x128xf32>
    %cst_17 = arith.constant dense<0.000000e+00> : vector<8xf32>
    %45 = vector.multi_reduction <add>, %44, %cst_17 [1] : vector<8x128xf32> to vector<8xf32>
    %46 = vector.shape_cast %45 : vector<8xf32> to vector<8x1xf32>
    %cst_18 = arith.constant 7.812500e-03 : f32
    %47 = vector.broadcast %cst_18 : f32 to vector<8x1xf32>
    %48 = arith.mulf %43, %47 : vector<8x1xf32>
    %cst_19 = arith.constant 7.812500e-03 : f32
    %49 = vector.broadcast %cst_19 : f32 to vector<8x1xf32>
    %50 = arith.mulf %46, %49 : vector<8x1xf32>
    %51 = arith.mulf %48, %48 : vector<8x1xf32>
    %52 = arith.subf %50, %51 : vector<8x1xf32>
    %c0_20 = arith.constant 0 : index
    %c0_21 = arith.constant 0 : index
    %53 = vector.load %arg4[%c0_20, %c0_21] : memref<8x1xf32, #tpu.memory_space<vmem>>, vector<8x1xf32>
    %cst_22 = arith.constant 9.99999974E-6 : f32
    %54 = vector.broadcast %cst_22 : f32 to vector<8x1xf32>
    %55 = arith.addf %52, %54 : vector<8x1xf32>
    %56 = math.rsqrt %55 : vector<8x1xf32>
    %57 = arith.mulf %53, %56 : vector<8x1xf32>
    %c0_23 = arith.constant 0 : index
    %c0_24 = arith.constant 0 : index
    %58 = vector.load %arg5[%c0_23, %c0_24] : memref<8x1xf32, #tpu.memory_space<vmem>>, vector<8x1xf32>
    %59 = arith.mulf %48, %57 : vector<8x1xf32>
    %60 = arith.subf %58, %59 : vector<8x1xf32>
    %61 = vector.broadcast %57 : vector<8x1xf32> to vector<8x128xf32>
    %62 = arith.mulf %41, %61 : vector<8x128xf32>
    %63 = vector.broadcast %60 : vector<8x1xf32> to vector<8x128xf32>
    %64 = arith.addf %62, %63 : vector<8x128xf32>
    %cst_25 = arith.constant 0.000000e+00 : f32
    %65 = vector.broadcast %cst_25 : f32 to vector<8x128xf32>
    %66 = arith.maximumf %64, %65 : vector<8x128xf32>
    %c0_26 = arith.constant 0 : index
    %c0_27 = arith.constant 0 : index
    %67 = vector.load %arg6[%c0_26, %c0_27] : memref<8x4xf32, #tpu.memory_space<vmem>>, vector<8x4xf32>
    %cst_28 = arith.constant dense<0.000000e+00> : vector<8x128xf32>
    %68 = tpu.matmul %67, %1, %cst_28 {dimension_numbers = #tpu.dot_dimension_numbers<[1], [0], [0], [1], [0, 0, 1, 1], [], []>} : vector<8x4xf32>, vector<4x128xf32>, vector<8x128xf32> -> vector<8x128xf32>
    %c0_29 = arith.constant 0 : index
    %c0_30 = arith.constant 0 : index
    %69 = vector.load %arg7[%c0_29, %c0_30] : memref<8x1xf32, #tpu.memory_space<vmem>>, vector<8x1xf32>
    %70 = vector.broadcast %69 : vector<8x1xf32> to vector<8x128xf32>
    %71 = arith.addf %68, %70 : vector<8x128xf32>
    %72 = arith.addf %66, %71 : vector<8x128xf32>
    %c0_31 = arith.constant 0 : index
    %c0_32 = arith.constant 0 : index
    %73 = vector.load %arg8[%c0_31, %c0_32] : memref<8x128xf32, #tpu.memory_space<vmem>>, vector<8x128xf32>
    tpu.vector_store %arg8[%c0_31, %c0_32], %72 {strides = array<i32>} : memref<8x128xf32, #tpu.memory_space<vmem>>, vector<8x128xf32>,
    return
  }
  func.func @transform_0(%arg0: i32) -> (i32, i32) {
    %c0_i32 = arith.constant 0 : i32
    %c0_i32_0 = arith.constant 0 : i32
    %c0_i32_1 = arith.constant 0 : i32
    return %c0_i32, %c0_i32_0 : i32, i32
  }
  func.func @transform_1(%arg0: i32) -> (i32, i32) {
    %c0_i32 = arith.constant 0 : i32
    %c0_i32_0 = arith.constant 0 : i32
    return %arg0, %c0_i32 : i32, i32
  }
  func.func @transform_2(%arg0: i32) -> (i32, i32) {
    %c0_i32 = arith.constant 0 : i32
    %c0_i32_0 = arith.constant 0 : i32
    return %arg0, %c0_i32 : i32, i32
  }
  func.func @transform_3(%arg0: i32) -> (i32, i32) {
    %c0_i32 = arith.constant 0 : i32
    %c0_i32_0 = arith.constant 0 : i32
    return %arg0, %c0_i32 : i32, i32
  }
  func.func @transform_4(%arg0: i32) -> (i32, i32) {
    %c0_i32 = arith.constant 0 : i32
    %c0_i32_0 = arith.constant 0 : i32
    return %arg0, %c0_i32 : i32, i32
  }
  func.func @transform_5(%arg0: i32) -> (i32, i32) {
    %c0_i32 = arith.constant 0 : i32
    %c0_i32_0 = arith.constant 0 : i32
    return %arg0, %c0_i32 : i32, i32
  }
  func.func @transform_6(%arg0: i32) -> (i32, i32) {
    %c0_i32 = arith.constant 0 : i32
    %c0_i32_0 = arith.constant 0 : i32
    return %arg0, %c0_i32 : i32, i32
  }
  func.func @transform_7(%arg0: i32) -> (i32, i32) {
    %c0_i32 = arith.constant 0 : i32
    %c0_i32_0 = arith.constant 0 : i32
    return %arg0, %c0_i32 : i32, i32
  }
}

</mosaic_0001>

<llo_original>
// kernel: tpu_custom_call.1
$region0: #{tpu_custom_call.1}
  #allocation0 [shape = 'u32[]', space=smem, size = 0x4, offset = 0x4, fixed_abs, tag = 'smem constant byte address 0x4 - core index']
  #allocation1 [shape = 'u32[144,128]{1,0:T(1,128)}', space=vmem, size = 0x12000, scoped, tag = 'internal scratch']
  %s0 = inlined_call_operand.vmem [shape: f32[4,130], index: 0, kind: input, shape index: {}]
  %s1 = inlined_call_operand.vmem [shape: f32[16,12], index: 1, kind: input, shape index: {}]
  %s2 = inlined_call_operand.vmem [shape: f32[16,1], index: 2, kind: input, shape index: {}]
  %s3 = inlined_call_operand.vmem [shape: f32[16,1], index: 3, kind: input, shape index: {}]
  %s4 = inlined_call_operand.vmem [shape: f32[16,1], index: 4, kind: input, shape index: {}]
  %s5 = inlined_call_operand.vmem [shape: f32[16,4], index: 5, kind: input, shape index: {}]
  %s6 = inlined_call_operand.vmem [shape: f32[16,1], index: 6, kind: input, shape index: {}]
  %s7 = inlined_call_operand.hbm [shape: f32[16,128], index: 7, kind: output, shape index: {}]
  %s8 = sld [smem:[#allocation0]]
  $region61: #{tpu_custom_call.1} parent=0
    _
  %s10 = ssub.s32 1, %s8
  %s11 = scalar_select 0, %s10, %s8
  $region1: #{tpu_custom_call.1} parent=0
    #allocation2 [shape = 'u8[8192]{0}', space=vmem, size = 0x2000, scoped, tag = 'output window, operand 0']
    #allocation3 [shape = 's32[2]{0}', space=sflag, size = 0x8, scoped, tag = 'scoped memory for tpu_custom_call.1']
    %12 = vsyncpa [#allocation3], 0
    %s13 = scalar_lea.sflag [#allocation3], 1
    %14 = vsyncpa %s13, 0
    loop: start=0, step=1, limit=4
    $region2: #{tpu_custom_call.1} parent=1 // loop_pre_header
      _
    $region3: #{tpu_custom_call.1} parent=1 // loop_header
      %s16 = sphi 0, %s20
      %p17 = scmp.ge.s32.totalorder %s16, 4
      %s24 = sphi 0, %s24
      %s26 = sphi 0, %s24
      %s27 = sphi 0, %s26
      %s41 = sphi 0, %s27
      %s47 = sphi 0, %s49
      %s50 = sphi 0, %s47
      %s51 = sphi 0, %s50
      %s67 = sphi 0, %s51
      %s73 = sphi 0, %s75
      %s76 = sphi 0, %s73
      %s77 = sphi 0, %s76
      %s93 = sphi 0, %s77
      %s99 = sphi 0, %s101
      %s102 = sphi 0, %s99
      %s103 = sphi 0, %s102
      %s119 = sphi 0, %s103
      %s125 = sphi 0, %s127
      %s128 = sphi 0, %s125
      %s129 = sphi 0, %s128
      %s145 = sphi 0, %s129
      %s151 = sphi 0, %s153
      %s154 = sphi 0, %s151
      %s155 = sphi 0, %s154
      %s171 = sphi 0, %s155
      %s177 = sphi 0, %s179
      %s180 = sphi 0, %s177
      %s181 = sphi 0, %s180
      %s197 = sphi 0, %s181
      %s203 = sphi 0, %s205
      %s206 = sphi 0, %s203
      %s207 = sphi 0, %s206
      %s223 = sphi 0, %s207
    $region4: #{tpu_custom_call.1} parent=1 // loop_header_branch
      %19 = sbr.rel (%p17) target = $region8
    $region5: #{tpu_custom_call.1} parent=1 // loop_body
      %s21 = ssub.s32 %s16, 1
      %s22 = ssub.s32 %s16, 2
      %s23 = sadd.s32 %s16, 1
      %s25 = sadd.s32 %s24, 1
      %p28 = scmp.eq.s32.totalorder %s16, 1
      %p29 = scmp.ne.s32.totalorder %s24, %s26
      %p30 = scmp.eq.s32.totalorder %s16, 0
      %p31 = por %p29, %p30
      %p32 = scmp.ne.s32.totalorder %s24, %s26
      %p33 = scmp.eq.s32.totalorder %s21, 1
      %p34 = por %p32, %p33
      %p35 = scmp.ne.s32.totalorder %s26, %s27
      %p36 = scmp.eq.s32.totalorder %s21, 0
      %p37 = por %p35, %p36
      %p38 = scmp.ne.s32.totalorder %s26, %s27
      %p39 = scmp.eq.s32.totalorder %s22, 1
      %p40 = por %p38, %p39
      %p42 = scmp.ne.s32.totalorder %s27, %s41
      %p43 = scmp.eq.s32.totalorder %s22, 0
      %p44 = por %p42, %p43
      %s45 = ssub.s32 %s16, %s23
      %p46 = scmp.eq.s32.totalorder %s45, 0
      %s48 = sadd.s32 %s47, 1
      %s49 = scalar_select %p46, %s47, %s48
      %p52 = pneg %p46
      %p53 = scmp.eq.s32.totalorder %s16, 1
      %p54 = por %p52, %p53
      %p55 = scmp.ne.s32.totalorder %s47, %s50
      %p56 = scmp.eq.s32.totalorder %s16, 0
      %p57 = por %p55, %p56
      %p58 = scmp.ne.s32.totalorder %s47, %s50
      %p59 = scmp.eq.s32.totalorder %s21, 1
      %p60 = por %p58, %p59
      %p61 = scmp.ne.s32.totalorder %s50, %s51
      %p62 = scmp.eq.s32.totalorder %s21, 0
      %p63 = por %p61, %p62
      %p64 = scmp.ne.s32.totalorder %s50, %s51
      %p65 = scmp.eq.s32.totalorder %s22, 1
      %p66 = por %p64, %p65
      %p68 = scmp.ne.s32.totalorder %s51, %s67
      %p69 = scmp.eq.s32.totalorder %s22, 0
      %p70 = por %p68, %p69
      %s71 = ssub.s32 %s16, %s23
      %p72 = scmp.eq.s32.totalorder %s71, 0
      %s74 = sadd.s32 %s73, 1
      %s75 = scalar_select %p72, %s73, %s74
      %p78 = pneg %p72
      %p79 = scmp.eq.s32.totalorder %s16, 1
      %p80 = por %p78, %p79
      %p81 = scmp.ne.s32.totalorder %s73, %s76
      %p82 = scmp.eq.s32.totalorder %s16, 0
      %p83 = por %p81, %p82
      %p84 = scmp.ne.s32.totalorder %s73, %s76
      %p85 = scmp.eq.s32.totalorder %s21, 1
      %p86 = por %p84, %p85
      %p87 = scmp.ne.s32.totalorder %s76, %s77
      %p88 = scmp.eq.s32.totalorder %s21, 0
      %p89 = por %p87, %p88
      %p90 = scmp.ne.s32.totalorder %s76, %s77
      %p91 = scmp.eq.s32.totalorder %s22, 1
      %p92 = por %p90, %p91
      %p94 = scmp.ne.s32.totalorder %s77, %s93
      %p95 = scmp.eq.s32.totalorder %s22, 0
      %p96 = por %p94, %p95
      %s97 = ssub.s32 %s16, %s23
      %p98 = scmp.eq.s32.totalorder %s97, 0
      %s100 = sadd.s32 %s99, 1
      %s101 = scalar_select %p98, %s99, %s100
      %p104 = pneg %p98
      %p105 = scmp.eq.s32.totalorder %s16, 1
      %p106 = por %p104, %p105
      %p107 = scmp.ne.s32.totalorder %s99, %s102
      %p108 = scmp.eq.s32.totalorder %s16, 0
      %p109 = por %p107, %p108
      %p110 = scmp.ne.s32.totalorder %s99, %s102
      %p111 = scmp.eq.s32.totalorder %s21, 1
      %p112 = por %p110, %p111
      %p113 = scmp.ne.s32.totalorder %s102, %s103
      %p114 = scmp.eq.s32.totalorder %s21, 0
      %p115 = por %p113, %p114
      %p116 = scmp.ne.s32.totalorder %s102, %s103
      %p117 = scmp.eq.s32.totalorder %s22, 1
      %p118 = por %p116, %p117
      %p120 = scmp.ne.s32.totalorder %s103, %s119
      %p121 = scmp.eq.s32.totalorder %s22, 0
      %p122 = por %p120, %p121
      %s123 = ssub.s32 %s16, %s23
      %p124 = scmp.eq.s32.totalorder %s123, 0
      %s126 = sadd.s32 %s125, 1
      %s127 = scalar_select %p124, %s125, %s126
      %p130 = pneg %p124
      %p131 = scmp.eq.s32.totalorder %s16, 1
      %p132 = por %p130, %p131
      %p133 = scmp.ne.s32.totalorder %s125, %s128
      %p134 = scmp.eq.s32.totalorder %s16, 0
      %p135 = por %p133, %p134
      %p136 = scmp.ne.s32.totalorder %s125, %s128
      %p137 = scmp.eq.s32.totalorder %s21, 1
      %p138 = por %p136, %p137
      %p139 = scmp.ne.s32.totalorder %s128, %s129
      %p140 = scmp.eq.s32.totalorder %s21, 0
      %p141 = por %p139, %p140
      %p142 = scmp.ne.s32.totalorder %s128, %s129
      %p143 = scmp.eq.s32.totalorder %s22, 1
      %p144 = por %p142, %p143
      %p146 = scmp.ne.s32.totalorder %s129, %s145
      %p147 = scmp.eq.s32.totalorder %s22, 0
      %p148 = por %p146, %p147
      %s149 = ssub.s32 %s16, %s23
      %p150 = scmp.eq.s32.totalorder %s149, 0
      %s152 = sadd.s32 %s151, 1
      %s153 = scalar_select %p150, %s151, %s152
      %p156 = pneg %p150
      %p157 = scmp.eq.s32.totalorder %s16, 1
      %p158 = por %p156, %p157
      %p159 = scmp.ne.s32.totalorder %s151, %s154
      %p160 = scmp.eq.s32.totalorder %s16, 0
      %p161 = por %p159, %p160
      %p162 = scmp.ne.s32.totalorder %s151, %s154
      %p163 = scmp.eq.s32.totalorder %s21, 1
      %p164 = por %p162, %p163
      %p165 = scmp.ne.s32.totalorder %s154, %s155
      %p166 = scmp.eq.s32.totalorder %s21, 0
      %p167 = por %p165, %p166
      %p168 = scmp.ne.s32.totalorder %s154, %s155
      %p169 = scmp.eq.s32.totalorder %s22, 1
      %p170 = por %p168, %p169
      %p172 = scmp.ne.s32.totalorder %s155, %s171
      %p173 = scmp.eq.s32.totalorder %s22, 0
      %p174 = por %p172, %p173
      %s175 = ssub.s32 %s16, %s23
      %p176 = scmp.eq.s32.totalorder %s175, 0
      %s178 = sadd.s32 %s177, 1
      %s179 = scalar_select %p176, %s177, %s178
      %p182 = pneg %p176
      %p183 = scmp.eq.s32.totalorder %s16, 1
      %p184 = por %p182, %p183
      %p185 = scmp.ne.s32.totalorder %s177, %s180
      %p186 = scmp.eq.s32.totalorder %s16, 0
      %p187 = por %p185, %p186
      %p188 = scmp.ne.s32.totalorder %s177, %s180
      %p189 = scmp.eq.s32.totalorder %s21, 1
      %p190 = por %p188, %p189
      %p191 = scmp.ne.s32.totalorder %s180, %s181
      %p192 = scmp.eq.s32.totalorder %s21, 0
      %p193 = por %p191, %p192
      %p194 = scmp.ne.s32.totalorder %s180, %s181
      %p195 = scmp.eq.s32.totalorder %s22, 1
      %p196 = por %p194, %p195
      %p198 = scmp.ne.s32.totalorder %s181, %s197
      %p199 = scmp.eq.s32.totalorder %s22, 0
      %p200 = por %p198, %p199
      %s201 = ssub.s32 %s16, %s23
      %p202 = scmp.eq.s32.totalorder %s201, 0
      %s204 = sadd.s32 %s203, 1
      %s205 = scalar_select %p202, %s203, %s204
      %p208 = pneg %p202
      %p209 = scmp.eq.s32.totalorder %s16, 1
      %p210 = por %p208, %p209
      %p211 = scmp.ne.s32.totalorder %s203, %s206
      %p212 = scmp.eq.s32.totalorder %s16, 0
      %p213 = por %p211, %p212
      %p214 = scmp.ne.s32.totalorder %s203, %s206
      %p215 = scmp.eq.s32.totalorder %s21, 1
      %p216 = por %p214, %p215
      %p217 = scmp.ne.s32.totalorder %s206, %s207
      %p218 = scmp.eq.s32.totalorder %s21, 0
      %p219 = por %p217, %p218
      %p220 = scmp.ne.s32.totalorder %s206, %s207
      %p221 = scmp.eq.s32.totalorder %s22, 1
      %p222 = por %p220, %p221
      %p224 = scmp.ne.s32.totalorder %s207, %s223
      %p225 = scmp.eq.s32.totalorder %s22, 0
      %p226 = por %p224, %p225
      %p227 = scmp.le.s32.totalorder 1, %s16
      %p228 = scmp.lt.s32.totalorder %s16, 3
      %p229 = pnand %p227, %p228
      %p230 = pneg %p229
      // Predicated region
      $region9: #{tpu_custom_call.1} parent=5 // pred_check
        _
      $region10: #{tpu_custom_call.1} parent=5 // pred_check_branch
        %232 = sbr.rel (%p229) target = $region12
      $region11: #{tpu_custom_call.1} parent=5 // pred_region
        %s233 = ssub.s32 %s16, 1
        // Predicated region
        $region13: #{tpu_custom_call.1} parent=11 // pred_check
          %p234 = pneg %p37
        $region14: #{tpu_custom_call.1} parent=11 // pred_check_branch
          %236 = sbr.rel (%p234) target = $region16
        $region15: #{tpu_custom_call.1} parent=11 // pred_region
          _
        $region16: #{tpu_custom_call.1} parent=11 // pred_fallthru
          _
      $region12: #{tpu_custom_call.1} parent=5 // pred_fallthru
        _
      %p237 = scmp.lt.s32.totalorder %s16, 2
      // Predicated region
      $region17: #{tpu_custom_call.1} parent=5 // pred_check
        %p238 = pneg %p237
      $region18: #{tpu_custom_call.1} parent=5 // pred_check_branch
        %240 = sbr.rel (%p238) target = $region20
      $region19: #{tpu_custom_call.1} parent=5 // pred_region
        // Predicated region
        $region21: #{tpu_custom_call.1} parent=19 // pred_check
          %p241 = pneg %p57
        $region22: #{tpu_custom_call.1} parent=19 // pred_check_branch
          %243 = sbr.rel (%p241) target = $region24
        $region23: #{tpu_custom_call.1} parent=19 // pred_region
          %p244 = scmp.lt.s32.totalorder %s16, 1
          %s245 = scalar_select %p244, %s16, 1
          %s246 = smul.addr %s245, 8
          %s247 = scalar_lea.vmem %s1, %s246
        $region24: #{tpu_custom_call.1} parent=19 // pred_fallthru
          _
        // Predicated region
        $region25: #{tpu_custom_call.1} parent=19 // pred_check
          %p248 = pneg %p83
        $region26: #{tpu_custom_call.1} parent=19 // pred_check_branch
          %250 = sbr.rel (%p248) target = $region28
        $region27: #{tpu_custom_call.1} parent=19 // pred_region
          %p251 = scmp.lt.s32.totalorder %s16, 1
          %s252 = scalar_select %p251, %s16, 1
          %s253 = smul.addr %s252, 8
          %s254 = scalar_lea.vmem %s2, %s253
        $region28: #{tpu_custom_call.1} parent=19 // pred_fallthru
          _
        // Predicated region
        $region29: #{tpu_custom_call.1} parent=19 // pred_check
          %p255 = pneg %p109
        $region30: #{tpu_custom_call.1} parent=19 // pred_check_branch
          %257 = sbr.rel (%p255) target = $region32
        $region31: #{tpu_custom_call.1} parent=19 // pred_region
          %p258 = scmp.lt.s32.totalorder %s16, 1
          %s259 = scalar_select %p258, %s16, 1
          %s260 = smul.addr %s259, 8
          %s261 = scalar_lea.vmem %s3, %s260
        $region32: #{tpu_custom_call.1} parent=19 // pred_fallthru
          _
        // Predicated region
        $region33: #{tpu_custom_call.1} parent=19 // pred_check
          %p262 = pneg %p135
        $region34: #{tpu_custom_call.1} parent=19 // pred_check_branch
          %264 = sbr.rel (%p262) target = $region36
        $region35: #{tpu_custom_call.1} parent=19 // pred_region
          %p265 = scmp.lt.s32.totalorder %s16, 1
          %s266 = scalar_select %p265, %s16, 1
          %s267 = smul.addr %s266, 8
          %s268 = scalar_lea.vmem %s4, %s267
        $region36: #{tpu_custom_call.1} parent=19 // pred_fallthru
          _
        // Predicated region
        $region37: #{tpu_custom_call.1} parent=19 // pred_check
          %p269 = pneg %p161
        $region38: #{tpu_custom_call.1} parent=19 // pred_check_branch
          %271 = sbr.rel (%p269) target = $region40
        $region39: #{tpu_custom_call.1} parent=19 // pred_region
          %p272 = scmp.lt.s32.totalorder %s16, 1
          %s273 = scalar_select %p272, %s16, 1
          %s274 = smul.addr %s273, 8
          %s275 = scalar_lea.vmem %s5, %s274
        $region40: #{tpu_custom_call.1} parent=19 // pred_fallthru
          _
        // Predicated region
        $region41: #{tpu_custom_call.1} parent=19 // pred_check
          %p276 = pneg %p187
        $region42: #{tpu_custom_call.1} parent=19 // pred_check_branch
          %278 = sbr.rel (%p276) target = $region44
        $region43: #{tpu_custom_call.1} parent=19 // pred_region
          %p279 = scmp.lt.s32.totalorder %s16, 1
          %s280 = scalar_select %p279, %s16, 1
          %s281 = smul.addr %s280, 8
          %s282 = scalar_lea.vmem %s6, %s281
        $region44: #{tpu_custom_call.1} parent=19 // pred_fallthru
          _
      $region20: #{tpu_custom_call.1} parent=5 // pred_fallthru
        _
      %p283 = scmp.le.s32.totalorder 1, %s16
      %p284 = scmp.lt.s32.totalorder %s16, 3
      %p285 = pnand %p283, %p284
      %p286 = pneg %p285
      // Predicated region
      $region45: #{tpu_custom_call.1} parent=5 // pred_check
        _
      $region46: #{tpu_custom_call.1} parent=5 // pred_check_branch
        %288 = sbr.rel (%p285) target = $region48
      $region47: #{tpu_custom_call.1} parent=5 // pred_region
        %s289 = ssub.s32 %s16, 1
        %p290 = pneg %p37
        %p291 = pneg %p34
        %p292 = scmp.lt.s32.totalorder %s21, 1
        %s293 = scalar_select %p292, %s21, 1
        %s294 = smul.addr %s293, 8
        %s295 = scalar_lea.vmem %s1, %s294
        %p296 = pneg %p63
        %p297 = pneg %p60
        %p298 = scmp.lt.s32.totalorder %s21, 1
        %s299 = scalar_select %p298, %s21, 1
        %s300 = smul.addr %s299, 8
        %s301 = scalar_lea.vmem %s2, %s300
        %p302 = pneg %p89
        %p303 = pneg %p86
        %p304 = scmp.lt.s32.totalorder %s21, 1
        %s305 = scalar_select %p304, %s21, 1
        %s306 = smul.addr %s305, 8
        %s307 = scalar_lea.vmem %s3, %s306
        %p308 = pneg %p115
        %p309 = pneg %p112
        %p310 = scmp.lt.s32.totalorder %s21, 1
        %s311 = scalar_select %p310, %s21, 1
        %s312 = smul.addr %s311, 8
        %s313 = scalar_lea.vmem %s4, %s312
        %p314 = pneg %p141
        %p315 = pneg %p138
        %p316 = scmp.lt.s32.totalorder %s21, 1
        %s317 = scalar_select %p316, %s21, 1
        %s318 = smul.addr %s317, 8
        %s319 = scalar_lea.vmem %s5, %s318
        %p320 = pneg %p167
        %p321 = pneg %p164
        %p322 = scmp.lt.s32.totalorder %s21, 1
        %s323 = scalar_select %p322, %s21, 1
        %s324 = smul.addr %s323, 8
        %s325 = scalar_lea.vmem %s6, %s324
        %p326 = pneg %p193
        %p327 = pneg %p190
        %p328 = pneg %p219
        %p329 = pneg %p216
        %s330 = sand.u32 %s206, 1
        %s331 = scalar_lea.sflag [#allocation3], %s330
        %s332 = sand.u32 %s206, 1
        %s333 = smul.addr %s332, 8
        %s334 = scalar_lea.vmem [#allocation2], %s333
        %p335 = scmp.lt.s32.totalorder %s21, 1
        %s336 = scalar_select %p335, %s21, 1
        %s337 = smul.addr %s336, 8
        %s338 = scalar_lea.vmem %s1, %s337
        %p339 = scmp.lt.s32.totalorder %s21, 1
        %s340 = scalar_select %p339, %s21, 1
        %s341 = smul.addr %s340, 8
        %s342 = scalar_lea.vmem %s2, %s341
        %p343 = scmp.lt.s32.totalorder %s21, 1
        %s344 = scalar_select %p343, %s21, 1
        %s345 = smul.addr %s344, 8
        %s346 = scalar_lea.vmem %s3, %s345
        %p347 = scmp.lt.s32.totalorder %s21, 1
        %s348 = scalar_select %p347, %s21, 1
        %s349 = smul.addr %s348, 8
        %s350 = scalar_lea.vmem %s4, %s349
        %p351 = scmp.lt.s32.totalorder %s21, 1
        %s352 = scalar_select %p351, %s21, 1
        %s353 = smul.addr %s352, 8
        %s354 = scalar_lea.vmem %s5, %s353
        %p355 = scmp.lt.s32.totalorder %s21, 1
        %s356 = scalar_select %p355, %s21, 1
        %s357 = smul.addr %s356, 8
        %s358 = scalar_lea.vmem %s6, %s357
        %v359 = vld [vmem:[%s338] sm:$0xff]
        %v360 = vld [vmem:[%s0] sm:$0xff]
        %v361 = vlaneseq
        %v362 = vand.u32 %v361, 127
        %vm363 = vcmp.lt.s32.totalorder %v362, 0
        %v364 = vsub.s32 0, %v362
        %v365 = vsel %vm363, %v364, %v362
        %v366 = vshrl.u32 %v365, 4
        %v367 = vand.u32 %v365, 15
        %v368 = vsub.s32 0, %v367
        %v369 = vsel %vm363, %v368, %v367
        %vm370 = vcmp.ne.s32.totalorder %v369, 0
        %vm371 = vcmp.lt.s32.totalorder %v369, 0
        %vm372 = vmand %vm371, %vm370
        %v373 = vadd.s32 %v369, 16
        %v374 = vsel %vm372, %v373, %v369
        %v375 = vld [vmem:[%s0] sm:$0xf]
        %vm376 = vcmp.ge.s32.totalorder %v374, 1
        %v377 = vsel %vm376, %v375, 0.0
        %379 = vrot.lane.b32.xlu0 %v359, 124
        %v380 = vpop.permute.xlu0 %379
        %v382 = vcombine.high %v360, %v360
        %383 = vrot.lane.b32.xlu0 %v360, 127
        %v384 = vpop.permute.xlu0 %383
        %385 = vrot.lane.b32.xlu0 %v382, 127
        %v386 = vpop.permute.xlu0 %385
        %vm387 = vcmask 1039360
        %v388 = vsel %vm387, %v384, %v386
        %vm389 = vcmask 31744
        %v390 = vsel %vm389, %v380, 0
        %vm392 = vcmask 1043456
        %v393 = vsel %vm392, %v388, 0
        %395 = vmatprep.subr.mxu0 0.0
        %396 = vmatpush1.msra.mxu0 %v393
        %397 = vmatprep.subr.mxu0 0.0
        %398 = vmatpush1.msra.mxu0 0.0
        %399 = vmatprep.subr.mxu0 0.0
        %400 = vmatpush1.msra.mxu0 0.0
        %401 = vmatprep.subr.mxu0 0.0
        %402 = vmatpush1.msra.mxu0 0.0
        %403 = vmatprep.subr.mxu0 0.0
        %404 = vmatpush1.msra.mxu0 0.0
        %405 = vmatprep.subr.mxu0 0.0
        %406 = vmatpush1.msra.mxu0 0.0
        %407 = vmatprep.subr.mxu0 0.0
        %408 = vmatpush1.msra.mxu0 0.0
        %409 = vmatprep.subr.mxu0 0.0
        %410 = vmatpush1.msra.mxu0 0.0
        %411 = vmatprep.subr.mxu0 0.0
        %412 = vmatpush1.msra.mxu0 0.0
        %413 = vmatprep.subr.mxu0 0.0
        %414 = vmatpush1.msra.mxu0 0.0
        %415 = vmatprep.subr.mxu0 0.0
        %416 = vmatpush1.msra.mxu0 0.0
        %417 = vmatprep.subr.mxu0 0.0
        %418 = vmatpush1.msra.mxu0 0.0
        %419 = vmatprep.subr.mxu0 0.0
        %420 = vmatpush1.msra.mxu0 0.0
        %421 = vmatprep.subr.mxu0 0.0
        %422 = vmatpush1.msra.mxu0 0.0
        %423 = vmatprep.subr.mxu0 0.0
        %424 = vmatpush1.msra.mxu0 0.0
        %425 = vmatprep.subr.mxu0 0.0
        %426 = vmatpush1.msra.mxu0 0.0
        %427 = vmatprep.subr.mxu0 0.0
        %428 = vmatpush1.msra.mxu0 0.0
        %429 = vmatprep.subr.mxu0 0.0
        %430 = vmatpush1.msra.mxu0 0.0
        %431 = vmatprep.subr.mxu0 0.0
        %432 = vmatpush1.msra.mxu0 0.0
        %433 = vmatprep.subr.mxu0 0.0
        %434 = vmatpush1.msra.mxu0 0.0
        %435 = vmatprep.subr.mxu0 0.0
        %436 = vmatpush1.msra.mxu0 0.0
        %437 = vmatprep.subr.mxu0 0.0
        %438 = vmatpush1.msra.mxu0 0.0
        %439 = vmatprep.subr.mxu0 0.0
        %440 = vmatpush1.msra.mxu0 0.0
        %441 = vmatprep.subr.mxu0 0.0
        %442 = vmatpush1.msra.mxu0 0.0
        %443 = vmatprep.subr.mxu0 0.0
        %444 = vmatpush1.msra.mxu0 0.0
        %445 = vmatprep.subr.mxu0 0.0
        %446 = vmatpush1.msra.mxu0 0.0
        %447 = vmatprep.subr.mxu0 0.0
        %448 = vmatpush1.msra.mxu0 0.0
        %449 = vmatprep.subr.mxu0 0.0
        %450 = vmatpush1.msra.mxu0 0.0
        %451 = vmatprep.subr.mxu0 0.0
        %452 = vmatpush1.msra.mxu0 0.0
        %453 = vmatprep.subr.mxu0 0.0
        %454 = vmatpush1.msra.mxu0 0.0
        %455 = vmatprep.subr.mxu0 0.0
        %456 = vmatpush1.msra.mxu0 0.0
        %457 = vmatprep.subr.mxu0 0.0
        %458 = vmatpush1.msra.mxu0 0.0
        %459 = vmatprep.mubr.f32.mxu0 0.0
        %460 = vmatmul.mubr.f32.gmra.mrb[0].mxu0 %v390
        %v461 = vpop.f32.mrb[0].mxu0
        %v462 = vadd.f32 0.0, %v461
        %v463 = vpop.f32.mrb[0].mxu0
        %464 = vdwg.mxu0
        %v465 = vsel %vm389, %v359, 0
        %v468 = vsel %vm392, %v377, 0
        %470 = vmatprep.subr.mxu0 0.0
        %471 = vmatpush1.msra.mxu0 %v468
        %472 = vmatprep.subr.mxu0 0.0
        %473 = vmatpush1.msra.mxu0 0.0
        %474 = vmatprep.subr.mxu0 0.0
        %475 = vmatpush1.msra.mxu0 0.0
        %476 = vmatprep.subr.mxu0 0.0
        %477 = vmatpush1.msra.mxu0 0.0
        %478 = vmatprep.subr.mxu0 0.0
        %479 = vmatpush1.msra.mxu0 0.0
        %480 = vmatprep.subr.mxu0 0.0
        %481 = vmatpush1.msra.mxu0 0.0
        %482 = vmatprep.subr.mxu0 0.0
        %483 = vmatpush1.msra.mxu0 0.0
        %484 = vmatprep.subr.mxu0 0.0
        %485 = vmatpush1.msra.mxu0 0.0
        %486 = vmatprep.subr.mxu0 0.0
        %487 = vmatpush1.msra.mxu0 0.0
        %488 = vmatprep.subr.mxu0 0.0
        %489 = vmatpush1.msra.mxu0 0.0
        %490 = vmatprep.subr.mxu0 0.0
        %491 = vmatpush1.msra.mxu0 0.0
        %492 = vmatprep.subr.mxu0 0.0
        %493 = vmatpush1.msra.mxu0 0.0
        %494 = vmatprep.subr.mxu0 0.0
        %495 = vmatpush1.msra.mxu0 0.0
        %496 = vmatprep.subr.mxu0 0.0
        %497 = vmatpush1.msra.mxu0 0.0
        %498 = vmatprep.subr.mxu0 0.0
        %499 = vmatpush1.msra.mxu0 0.0
        %500 = vmatprep.subr.mxu0 0.0
        %501 = vmatpush1.msra.mxu0 0.0
        %502 = vmatprep.subr.mxu0 0.0
        %503 = vmatpush1.msra.mxu0 0.0
        %504 = vmatprep.subr.mxu0 0.0
        %505 = vmatpush1.msra.mxu0 0.0
        %506 = vmatprep.subr.mxu0 0.0
        %507 = vmatpush1.msra.mxu0 0.0
        %508 = vmatprep.subr.mxu0 0.0
        %509 = vmatpush1.msra.mxu0 0.0
        %510 = vmatprep.subr.mxu0 0.0
        %511 = vmatpush1.msra.mxu0 0.0
        %512 = vmatprep.subr.mxu0 0.0
        %513 = vmatpush1.msra.mxu0 0.0
        %514 = vmatprep.subr.mxu0 0.0
        %515 = vmatpush1.msra.mxu0 0.0
        %516 = vmatprep.subr.mxu0 0.0
        %517 = vmatpush1.msra.mxu0 0.0
        %518 = vmatprep.subr.mxu0 0.0
        %519 = vmatpush1.msra.mxu0 0.0
        %520 = vmatprep.subr.mxu0 0.0
        %521 = vmatpush1.msra.mxu0 0.0
        %522 = vmatprep.subr.mxu0 0.0
        %523 = vmatpush1.msra.mxu0 0.0
        %524 = vmatprep.subr.mxu0 0.0
        %525 = vmatpush1.msra.mxu0 0.0
        %526 = vmatprep.subr.mxu0 0.0
        %527 = vmatpush1.msra.mxu0 0.0
        %528 = vmatprep.subr.mxu0 0.0
        %529 = vmatpush1.msra.mxu0 0.0
        %530 = vmatprep.subr.mxu0 0.0
        %531 = vmatpush1.msra.mxu0 0.0
        %532 = vmatprep.subr.mxu0 0.0
        %533 = vmatpush1.msra.mxu0 0.0
        %534 = vmatprep.mubr.f32.mxu0 0.0
        %535 = vmatmul.mubr.f32.gmra.mrb[0].mxu0 %v465
        %v536 = vpop.f32.mrb[0].mxu0
        %v537 = vadd.f32 %v462, %v536
        %v538 = vpop.f32.mrb[0].mxu0
        %539 = vdwg.mxu0
        %v540 = vld [vmem:[%s0] sm:$0xff]
        %vm541 = vcmp.lt.s32.totalorder %v374, 15
        %v543 = vcombine.high %v540, %v540
        %544 = vrot.lane.b32.xlu0 %v540, 126
        %v545 = vpop.permute.xlu0 %544
        %546 = vrot.lane.b32.xlu0 %v543, 126
        %v547 = vpop.permute.xlu0 %546
        %vm548 = vcmask 1031168
        %v549 = vsel %vm548, %v545, %v547
        %v551 = vsel %vm541, %v549, 0.0
        %552 = vrot.lane.b32.xlu0 %v359, 120
        %v553 = vpop.permute.xlu0 %552
        %v554 = vsel %vm389, %v553, 0
        %v557 = vsel %vm392, %v551, 0
        %559 = vmatprep.subr.mxu0 0.0
        %560 = vmatpush1.msra.mxu0 %v557
        %561 = vmatprep.subr.mxu0 0.0
        %562 = vmatpush1.msra.mxu0 0.0
        %563 = vmatprep.subr.mxu0 0.0
        %564 = vmatpush1.msra.mxu0 0.0
        %565 = vmatprep.subr.mxu0 0.0
        %566 = vmatpush1.msra.mxu0 0.0
        %567 = vmatprep.subr.mxu0 0.0
        %568 = vmatpush1.msra.mxu0 0.0
        %569 = vmatprep.subr.mxu0 0.0
        %570 = vmatpush1.msra.mxu0 0.0
        %571 = vmatprep.subr.mxu0 0.0
        %572 = vmatpush1.msra.mxu0 0.0
        %573 = vmatprep.subr.mxu0 0.0
        %574 = vmatpush1.msra.mxu0 0.0
        %575 = vmatprep.subr.mxu0 0.0
        %576 = vmatpush1.msra.mxu0 0.0
        %577 = vmatprep.subr.mxu0 0.0
        %578 = vmatpush1.msra.mxu0 0.0
        %579 = vmatprep.subr.mxu0 0.0
        %580 = vmatpush1.msra.mxu0 0.0
        %581 = vmatprep.subr.mxu0 0.0
        %582 = vmatpush1.msra.mxu0 0.0
        %583 = vmatprep.subr.mxu0 0.0
        %584 = vmatpush1.msra.mxu0 0.0
        %585 = vmatprep.subr.mxu0 0.0
        %586 = vmatpush1.msra.mxu0 0.0
        %587 = vmatprep.subr.mxu0 0.0
        %588 = vmatpush1.msra.mxu0 0.0
        %589 = vmatprep.subr.mxu0 0.0
        %590 = vmatpush1.msra.mxu0 0.0
        %591 = vmatprep.subr.mxu0 0.0
        %592 = vmatpush1.msra.mxu0 0.0
        %593 = vmatprep.subr.mxu0 0.0
        %594 = vmatpush1.msra.mxu0 0.0
        %595 = vmatprep.subr.mxu0 0.0
        %596 = vmatpush1.msra.mxu0 0.0
        %597 = vmatprep.subr.mxu0 0.0
        %598 = vmatpush1.msra.mxu0 0.0
        %599 = vmatprep.subr.mxu0 0.0
        %600 = vmatpush1.msra.mxu0 0.0
        %601 = vmatprep.subr.mxu0 0.0
        %602 = vmatpush1.msra.mxu0 0.0
        %603 = vmatprep.subr.mxu0 0.0
        %604 = vmatpush1.msra.mxu0 0.0
        %605 = vmatprep.subr.mxu0 0.0
        %606 = vmatpush1.msra.mxu0 0.0
        %607 = vmatprep.subr.mxu0 0.0
        %608 = vmatpush1.msra.mxu0 0.0
        %609 = vmatprep.subr.mxu0 0.0
        %610 = vmatpush1.msra.mxu0 0.0
        %611 = vmatprep.subr.mxu0 0.0
        %612 = vmatpush1.msra.mxu0 0.0
        %613 = vmatprep.subr.mxu0 0.0
        %614 = vmatpush1.msra.mxu0 0.0
        %615 = vmatprep.subr.mxu0 0.0
        %616 = vmatpush1.msra.mxu0 0.0
        %617 = vmatprep.subr.mxu0 0.0
        %618 = vmatpush1.msra.mxu0 0.0
        %619 = vmatprep.subr.mxu0 0.0
        %620 = vmatpush1.msra.mxu0 0.0
        %621 = vmatprep.subr.mxu0 0.0
        %622 = vmatpush1.msra.mxu0 0.0
        %623 = vmatprep.mubr.f32.mxu0 0.0
        %624 = vmatmul.mubr.f32.gmra.mrb[0].mxu0 %v554
        %v625 = vpop.f32.mrb[0].mxu0
        %v626 = vadd.f32 0.0, %v625
        %v627 = vpop.f32.mrb[0].mxu0
        %628 = vdwg.mxu0
        %v629 = vadd.f32 %v537, %v626
        %v630 = vld [vmem:[%s342] sm:$0xff]
        %632 = vset.pattern.permute.xlu0 0
        %633 = vperm.xlu0 %632, %v630
        %v634 = vpop.permute.xlu0 %633
        %v636 = vadd.f32 %v629, %v634
        %637 = vadd.xlane.f32.xlu0 %v636
        %v638 = vpop.xlane.xlu0 %637
        %v639 = vmul.f32 %v636, %v636
        %640 = vadd.xlane.f32.xlu0 %v639
        %v641 = vpop.xlane.xlu0 %640
        %v642 = vmul.f32 %v638, 0.0078125
        %v643 = vmul.f32 %v641, 0.0078125
        %v644 = vmul.f32 %v642, %v642
        %v645 = vsub.f32 %v643, %v644
        %v646 = vld [vmem:[%s346] sm:$0xff]
        %v647 = vadd.f32 %v645, 1e-05
        %v648 = vrsqrt.pop %v647
        %v649 = vmul.f32 %v646, %v648
        %v650 = vld [vmem:[%s350] sm:$0xff]
        %v651 = vmul.f32 %v642, %v649
        %v652 = vsub.f32 %v650, %v651
        %654 = vset.pattern.permute.xlu0 0
        %655 = vperm.xlu0 %654, %v649
        %v656 = vpop.permute.xlu0 %655
        %v658 = vmul.f32 %v636, %v656
        %660 = vset.pattern.permute.xlu0 0
        %661 = vperm.xlu0 %660, %v652
        %v662 = vpop.permute.xlu0 %661
        %v664 = vadd.f32 %v658, %v662
        %v665 = vmax.f32 %v664, 0.0
        %v666 = vld [vmem:[%s354] sm:$0xff]
        %v667 = vld [vmem:[%s358] sm:$0xff]
        %669 = vset.pattern.permute.xlu0 0
        %670 = vperm.xlu0 %669, %v667
        %v671 = vpop.permute.xlu0 %670
        %v674 = vsel %vm389, %v666, 0
        %676 = vmatprep.subr.mxu0 0.0
        %677 = vmatpush1.msra.mxu0 %v393
        %678 = vmatprep.subr.mxu0 0.0
        %679 = vmatpush1.msra.mxu0 0.0
        %680 = vmatprep.subr.mxu0 0.0
        %681 = vmatpush1.msra.mxu0 0.0
        %682 = vmatprep.subr.mxu0 0.0
        %683 = vmatpush1.msra.mxu0 0.0
        %684 = vmatprep.subr.mxu0 0.0
        %685 = vmatpush1.msra.mxu0 0.0
        %686 = vmatprep.subr.mxu0 0.0
        %687 = vmatpush1.msra.mxu0 0.0
        %688 = vmatprep.subr.mxu0 0.0
        %689 = vmatpush1.msra.mxu0 0.0
        %690 = vmatprep.subr.mxu0 0.0
        %691 = vmatpush1.msra.mxu0 0.0
        %692 = vmatprep.subr.mxu0 0.0
        %693 = vmatpush1.msra.mxu0 0.0
        %694 = vmatprep.subr.mxu0 0.0
        %695 = vmatpush1.msra.mxu0 0.0
        %696 = vmatprep.subr.mxu0 0.0
        %697 = vmatpush1.msra.mxu0 0.0
        %698 = vmatprep.subr.mxu0 0.0
        %699 = vmatpush1.msra.mxu0 0.0
        %700 = vmatprep.subr.mxu0 0.0
        %701 = vmatpush1.msra.mxu0 0.0
        %702 = vmatprep.subr.mxu0 0.0
        %703 = vmatpush1.msra.mxu0 0.0
        %704 = vmatprep.subr.mxu0 0.0
        %705 = vmatpush1.msra.mxu0 0.0
        %706 = vmatprep.subr.mxu0 0.0
        %707 = vmatpush1.msra.mxu0 0.0
        %708 = vmatprep.subr.mxu0 0.0
        %709 = vmatpush1.msra.mxu0 0.0
        %710 = vmatprep.subr.mxu0 0.0
        %711 = vmatpush1.msra.mxu0 0.0
        %712 = vmatprep.subr.mxu0 0.0
        %713 = vmatpush1.msra.mxu0 0.0
        %714 = vmatprep.subr.mxu0 0.0
        %715 = vmatpush1.msra.mxu0 0.0
        %716 = vmatprep.subr.mxu0 0.0
        %717 = vmatpush1.msra.mxu0 0.0
        %718 = vmatprep.subr.mxu0 0.0
        %719 = vmatpush1.msra.mxu0 0.0
        %720 = vmatprep.subr.mxu0 0.0
        %721 = vmatpush1.msra.mxu0 0.0
        %722 = vmatprep.subr.mxu0 0.0
        %723 = vmatpush1.msra.mxu0 0.0
        %724 = vmatprep.subr.mxu0 0.0
        %725 = vmatpush1.msra.mxu0 0.0
        %726 = vmatprep.subr.mxu0 0.0
        %727 = vmatpush1.msra.mxu0 0.0
        %728 = vmatprep.subr.mxu0 0.0
        %729 = vmatpush1.msra.mxu0 0.0
        %730 = vmatprep.subr.mxu0 0.0
        %731 = vmatpush1.msra.mxu0 0.0
        %732 = vmatprep.subr.mxu0 0.0
        %733 = vmatpush1.msra.mxu0 0.0
        %734 = vmatprep.subr.mxu0 0.0
        %735 = vmatpush1.msra.mxu0 0.0
        %736 = vmatprep.subr.mxu0 0.0
        %737 = vmatpush1.msra.mxu0 0.0
        %738 = vmatprep.subr.mxu0 0.0
        %739 = vmatpush1.msra.mxu0 0.0
        %740 = vmatprep.mubr.f32.mxu0 0.0
        %741 = vmatmul.mubr.f32.gmra.mrb[0].mxu0 %v674
        %v742 = vpop.f32.mrb[0].mxu0
        %v743 = vadd.f32 %v671, %v742
        %v744 = vpop.f32.mrb[0].mxu0
        %745 = vdwg.mxu0
        %v746 = vadd.f32 %v665, %v743
        %747 = vst [vmem:[%s334] sm:$0xff] %v746
        %s748 = sand.u32 %s206, 1
        %s749 = scalar_lea.sflag [#allocation3], %s748
        %s750 = sand.u32 %s206, 1
        %s751 = smul.addr %s750, 8
        %s752 = scalar_lea.vmem [#allocation2], %s751
        // Predicated region
        $region49: #{tpu_custom_call.1} parent=47 // pred_check
          %p753 = pneg %p216
        $region50: #{tpu_custom_call.1} parent=47 // pred_check_branch
          %755 = sbr.rel (%p753) target = $region52
        $region51: #{tpu_custom_call.1} parent=47 // pred_region
          %s757 = ssub.s32 128, 128
          %758 = vsyncadd %s749, %s757
          %s759 = smul.addr %s21, 128
          %s760 = scalar_lea.hbm %s7, %s759
          %s762 = sshll.u32 %s752, 4
          %s763 = int_to_ptr.vmem [resolvable:$true] %s762
          %765 = dma.vmem_to_hbm [thread:$0]  %s763, 128, %s760, %s749
        $region52: #{tpu_custom_call.1} parent=47 // pred_fallthru
          _
      $region48: #{tpu_custom_call.1} parent=5 // pred_fallthru
        _
      %p766 = scmp.le.s32.totalorder 2, %s16
      // Predicated region
      $region53: #{tpu_custom_call.1} parent=5 // pred_check
        %p767 = pneg %p766
      $region54: #{tpu_custom_call.1} parent=5 // pred_check_branch
        %769 = sbr.rel (%p767) target = $region56
      $region55: #{tpu_custom_call.1} parent=5 // pred_region
        %s770 = ssub.s32 %s16, 2
        // Predicated region
        $region57: #{tpu_custom_call.1} parent=55 // pred_check
          %p771 = pneg %p222
        $region58: #{tpu_custom_call.1} parent=55 // pred_check_branch
          %773 = sbr.rel (%p771) target = $region60
        $region59: #{tpu_custom_call.1} parent=55 // pred_region
          %s774 = sand.u32 %s207, 1
          %s775 = scalar_lea.sflag [#allocation3], %s774
          %s776 = sand.u32 %s207, 1
          %s777 = smul.addr %s776, 8
          %s778 = scalar_lea.vmem [#allocation2], %s777
          %779 = dma.done %s775, 128
        $region60: #{tpu_custom_call.1} parent=55 // pred_fallthru
          _
      $region56: #{tpu_custom_call.1} parent=5 // pred_fallthru
        _
    $region6: #{tpu_custom_call.1} parent=1 // loop_footer
      %s20 = sadd.s32 1, %s16
    $region7: #{tpu_custom_call.1} parent=1 // loop_footer_branch
      %15 = sbr.rel target = $region3
    $region8: #{tpu_custom_call.1} parent=1 // loop_exit
      _
    %780 = vsyncpa [#allocation3], 1
    %s781 = scalar_lea.sflag [#allocation3], 1
    %782 = vsyncpa %s781, 1

</llo_original>
